<compile_context>
chip_gen: v5e
topology: v5e:2x2
jax: 0.10.0
libtpu: 0.0.40
codegen_flags: <defaults>
</compile_context>

<pallas_src>
from functools import partial

import jax
import jax.numpy as jnp
from jax.experimental import pallas as pl
from jax.experimental.pallas import tpu as pltpu

BN_EPS = 1e-5


def classifier_head_kernel(x_ref, w_ref, gamma_ref, beta_ref, o_ref, *, num_layers, batch):
    """Fused hot path: per layer, bf16 MXU matmul + one-pass batch-norm + ReLU + residual add."""
    x = x_ref[...]                      # (B, D) f32 — residual chain stays in f32
    inv_b = jnp.float32(1.0 / batch)
    for l in range(num_layers):         # static, small layer count -> unrolled
        residual = x
        # Linear (bias dropped: algebraically cancelled by train-mode BatchNorm below).
        # bf16 operands -> native MXU path; f32 accumulation.
        h = jnp.dot(x.astype(jnp.bfloat16), w_ref[l],
                    preferred_element_type=jnp.float32)
        # BatchNorm1d, training mode: one-pass biased batch statistics over axis 0.
        s = jnp.sum(h, axis=0, keepdims=True)
        ss = jnp.sum(h * h, axis=0, keepdims=True)
        mean = s * inv_b
        var = ss * inv_b - mean * mean
        # Fold gamma/beta into a single per-feature scale/shift ((1, D) row vectors — cheap).
        scale = gamma_ref[l][None, :] * jax.lax.rsqrt(var + BN_EPS)
        shift = beta_ref[l][None, :] - mean * scale
        h = h * scale + shift
        # ReLU
        h = jnp.maximum(h, 0.0)
        # Dropout(p=0) is the identity.
        x = h + residual
    o_ref[...] = x.astype(o_ref.dtype)


def classifier_head(x, W, gamma, beta):
    """x: (B, D) f32; W: (L, D, D) (pre-transposed vs. PyTorch); gamma/beta: (L, D).

    Single-block kernel — no grid at these shapes (launch-overhead dominated).
    Weights are cast to bf16 once on the host to halve HBM->VMEM DMA bytes and hit the
    bf16-native MXU on v6e/v7x.
    """
    L = W.shape[0]
    B, D = x.shape
    vmem = pl.BlockSpec(memory_space=pltpu.MemorySpace.VMEM)
    return pl.pallas_call(
        partial(classifier_head_kernel, num_layers=L, batch=B),
        out_shape=jax.ShapeDtypeStruct((B, D), x.dtype),
        in_specs=[vmem, vmem, vmem, vmem],
        out_specs=vmem,
    )(x, W.astype(jnp.bfloat16), gamma, beta)


def classifier_head_ref(x, W, b, gamma, beta):
    """Pure-JAX f32 reference (same math as the PyTorch module in training mode, dropout=0).

    Keeps the Linear bias and the two-pass variance to validate the kernel's algebraic
    simplifications (bias cancellation, one-pass stats, folded affine, bf16 operands).
    """
    for l in range(W.shape[0]):
        residual = x
        h = x @ W[l] + b[l]
        mean = jnp.mean(h, axis=0, keepdims=True)
        var = jnp.mean((h - mean) ** 2, axis=0, keepdims=True)
        h = (h - mean) / jnp.sqrt(var + BN_EPS)
        h = h * gamma[l] + beta[l]
        h = jnp.maximum(h, 0.0)
        x = h + residual
    return x


if __name__ == "__main__":
    # Small shapes consistent with the module: ClassifierHead(in_dim=128, out_dim=128,
    # layer_dims=[128, 128], dropout=0) applied to a (batch=16, 128) input.
    B = 16
    in_dim = 128
    out_dim = 128
    layer_dims = [128, 128]
    dims = [in_dim] + layer_dims + [out_dim]
    L = len(dims) - 1

    key = jax.random.PRNGKey(0)
    keys = jax.random.split(key, 2 * L + 1)

    x = jax.random.normal(keys[0], (B, in_dim), dtype=jnp.float32)

    Ws, bs = [], []
    for i in range(L):
        fan_in = dims[i]
        bound = fan_in ** -0.5  # PyTorch nn.Linear default init range
        Wi = jax.random.uniform(
            keys[1 + 2 * i], (dims[i], dims[i + 1]), minval=-bound, maxval=bound, dtype=jnp.float32
        )
        bi = jax.random.uniform(
            keys[2 + 2 * i], (dims[i + 1],), minval=-bound, maxval=bound, dtype=jnp.float32
        )
        Ws.append(Wi)
        bs.append(bi)
    W = jnp.stack(Ws)          # (L, D_in, D_out), already transposed vs. PyTorch (out, in)
    b = jnp.stack(bs)          # (L, D) — only used by the reference; kernel drops it (BN cancels it)
    gamma = jnp.ones((L, out_dim), jnp.float32)   # BatchNorm1d weight init
    beta = jnp.zeros((L, out_dim), jnp.float32)   # BatchNorm1d bias init

    out = classifier_head(x, W, gamma, beta)
    jax.block_until_ready(out)

    ref = classifier_head_ref(x, W, b, gamma, beta)
    assert out.shape == (B, out_dim)
    # bf16 matmul operands -> loosened tolerance vs. the f32 reference.
    assert jnp.allclose(out, ref, atol=5e-2, rtol=5e-2), float(jnp.max(jnp.abs(out - ref)))

    print("KERNEL_OK")
</pallas_src>

<mosaic_0001>
module attributes {stable_mosaic.version = 11 : i64} {
  func.func @classifier_head_kernel(%arg0: memref<16x128xf32, #tpu.memory_space<vmem>>, %arg1: memref<3x128x128xbf16, #tpu.memory_space<vmem>>, %arg2: memref<3x128xf32, #tpu.memory_space<vmem>>, %arg3: memref<3x128xf32, #tpu.memory_space<vmem>>, %arg4: memref<16x128xf32, #tpu.memory_space<vmem>>) attributes {dimension_semantics = [], scalar_prefetch = 0 : i64, scratch_operands = 0 : i64, tpu.core_type = #tpu.core_type<tc>} {
    %c0 = arith.constant 0 : index
    %c0_0 = arith.constant 0 : index
    %0 = vector.load %arg0[%c0, %c0_0] : memref<16x128xf32, #tpu.memory_space<vmem>>, vector<16x128xf32>
    %1 = arith.truncf %0 : vector<16x128xf32> to vector<16x128xbf16>
    %c0_1 = arith.constant 0 : index
    %c0_2 = arith.constant 0 : index
    %c0_3 = arith.constant 0 : index
    %2 = vector.load %arg1[%c0_1, %c0_2, %c0_3] : memref<3x128x128xbf16, #tpu.memory_space<vmem>>, vector<1x128x128xbf16>
    %3 = vector.shape_cast %2 : vector<1x128x128xbf16> to vector<128x128xbf16>
    %cst = arith.constant dense<0.000000e+00> : vector<16x128xf32>
    %4 = tpu.matmul %1, %3, %cst {dimension_numbers = #tpu.dot_dimension_numbers<[1], [0], [0], [1], [0, 0, 1, 1], [], []>} : vector<16x128xbf16>, vector<128x128xbf16>, vector<16x128xf32> -> vector<16x128xf32>
    %cst_4 = arith.constant dense<0.000000e+00> : vector<128xf32>
    %5 = vector.multi_reduction <add>, %4, %cst_4 [0] : vector<16x128xf32> to vector<128xf32>
    %6 = vector.shape_cast %5 : vector<128xf32> to vector<1x128xf32>
    %7 = arith.mulf %4, %4 : vector<16x128xf32>
    %cst_5 = arith.constant dense<0.000000e+00> : vector<128xf32>
    %8 = vector.multi_reduction <add>, %7, %cst_5 [0] : vector<16x128xf32> to vector<128xf32>
    %9 = vector.shape_cast %8 : vector<128xf32> to vector<1x128xf32>
    %cst_6 = arith.constant 6.250000e-02 : f32
    %10 = vector.broadcast %cst_6 : f32 to vector<1x128xf32>
    %11 = arith.mulf %6, %10 : vector<1x128xf32>
    %cst_7 = arith.constant 6.250000e-02 : f32
    %12 = vector.broadcast %cst_7 : f32 to vector<1x128xf32>
    %13 = arith.mulf %9, %12 : vector<1x128xf32>
    %14 = arith.mulf %11, %11 : vector<1x128xf32>
    %15 = arith.subf %13, %14 : vector<1x128xf32>
    %c0_8 = arith.constant 0 : index
    %c0_9 = arith.constant 0 : index
    %16 = vector.load %arg2[%c0_8, %c0_9] : memref<3x128xf32, #tpu.memory_space<vmem>>, vector<1x128xf32>
    %17 = vector.shape_cast %16 : vector<1x128xf32> to vector<128xf32>
    %18 = vector.shape_cast %17 : vector<128xf32> to vector<1x128xf32>
    %cst_10 = arith.constant 9.99999974E-6 : f32
    %19 = vector.broadcast %cst_10 : f32 to vector<1x128xf32>
    %20 = arith.addf %15, %19 : vector<1x128xf32>
    %21 = math.rsqrt %20 : vector<1x128xf32>
    %22 = arith.mulf %18, %21 : vector<1x128xf32>
    %c0_11 = arith.constant 0 : index
    %c0_12 = arith.constant 0 : index
    %23 = vector.load %arg3[%c0_11, %c0_12] : memref<3x128xf32, #tpu.memory_space<vmem>>, vector<1x128xf32>
    %24 = vector.shape_cast %23 : vector<1x128xf32> to vector<128xf32>
    %25 = vector.shape_cast %24 : vector<128xf32> to vector<1x128xf32>
    %26 = arith.mulf %11, %22 : vector<1x128xf32>
    %27 = arith.subf %25, %26 : vector<1x128xf32>
    %28 = vector.broadcast %22 : vector<1x128xf32> to vector<16x128xf32>
    %29 = arith.mulf %4, %28 : vector<16x128xf32>
    %30 = vector.broadcast %27 : vector<1x128xf32> to vector<16x128xf32>
    %31 = arith.addf %29, %30 : vector<16x128xf32>
    %cst_13 = arith.constant 0.000000e+00 : f32
    %32 = vector.broadcast %cst_13 : f32 to vector<16x128xf32>
    %33 = arith.maximumf %31, %32 : vector<16x128xf32>
    %34 = arith.addf %33, %0 : vector<16x128xf32>
    %35 = arith.truncf %34 : vector<16x128xf32> to vector<16x128xbf16>
    %c1 = arith.constant 1 : index
    %c0_14 = arith.constant 0 : index
    %c0_15 = arith.constant 0 : index
    %36 = vector.load %arg1[%c1, %c0_14, %c0_15] : memref<3x128x128xbf16, #tpu.memory_space<vmem>>, vector<1x128x128xbf16>
    %37 = vector.shape_cast %36 : vector<1x128x128xbf16> to vector<128x128xbf16>
    %cst_16 = arith.constant dense<0.000000e+00> : vector<16x128xf32>
    %38 = tpu.matmul %35, %37, %cst_16 {dimension_numbers = #tpu.dot_dimension_numbers<[1], [0], [0], [1], [0, 0, 1, 1], [], []>} : vector<16x128xbf16>, vector<128x128xbf16>, vector<16x128xf32> -> vector<16x128xf32>
    %cst_17 = arith.constant dense<0.000000e+00> : vector<128xf32>
    %39 = vector.multi_reduction <add>, %38, %cst_17 [0] : vector<16x128xf32> to vector<128xf32>
    %40 = vector.shape_cast %39 : vector<128xf32> to vector<1x128xf32>
    %41 = arith.mulf %38, %38 : vector<16x128xf32>
    %cst_18 = arith.constant dense<0.000000e+00> : vector<128xf32>
    %42 = vector.multi_reduction <add>, %41, %cst_18 [0] : vector<16x128xf32> to vector<128xf32>
    %43 = vector.shape_cast %42 : vector<128xf32> to vector<1x128xf32>
    %cst_19 = arith.constant 6.250000e-02 : f32
    %44 = vector.broadcast %cst_19 : f32 to vector<1x128xf32>
    %45 = arith.mulf %40, %44 : vector<1x128xf32>
    %cst_20 = arith.constant 6.250000e-02 : f32
    %46 = vector.broadcast %cst_20 : f32 to vector<1x128xf32>
    %47 = arith.mulf %43, %46 : vector<1x128xf32>
    %48 = arith.mulf %45, %45 : vector<1x128xf32>
    %49 = arith.subf %47, %48 : vector<1x128xf32>
    %c1_21 = arith.constant 1 : index
    %c0_22 = arith.constant 0 : index
    %50 = vector.load %arg2[%c1_21, %c0_22] : memref<3x128xf32, #tpu.memory_space<vmem>>, vector<1x128xf32>
    %51 = vector.shape_cast %50 : vector<1x128xf32> to vector<128xf32>
    %52 = vector.shape_cast %51 : vector<128xf32> to vector<1x128xf32>
    %cst_23 = arith.constant 9.99999974E-6 : f32
    %53 = vector.broadcast %cst_23 : f32 to vector<1x128xf32>
    %54 = arith.addf %49, %53 : vector<1x128xf32>
    %55 = math.rsqrt %54 : vector<1x128xf32>
    %56 = arith.mulf %52, %55 : vector<1x128xf32>
    %c1_24 = arith.constant 1 : index
    %c0_25 = arith.constant 0 : index
    %57 = vector.load %arg3[%c1_24, %c0_25] : memref<3x128xf32, #tpu.memory_space<vmem>>, vector<1x128xf32>
    %58 = vector.shape_cast %57 : vector<1x128xf32> to vector<128xf32>
    %59 = vector.shape_cast %58 : vector<128xf32> to vector<1x128xf32>
    %60 = arith.mulf %45, %56 : vector<1x128xf32>
    %61 = arith.subf %59, %60 : vector<1x128xf32>
    %62 = vector.broadcast %56 : vector<1x128xf32> to vector<16x128xf32>
    %63 = arith.mulf %38, %62 : vector<16x128xf32>
    %64 = vector.broadcast %61 : vector<1x128xf32> to vector<16x128xf32>
    %65 = arith.addf %63, %64 : vector<16x128xf32>
    %cst_26 = arith.constant 0.000000e+00 : f32
    %66 = vector.broadcast %cst_26 : f32 to vector<16x128xf32>
    %67 = arith.maximumf %65, %66 : vector<16x128xf32>
    %68 = arith.addf %67, %34 : vector<16x128xf32>
    %69 = arith.truncf %68 : vector<16x128xf32> to vector<16x128xbf16>
    %c2 = arith.constant 2 : index
    %c0_27 = arith.constant 0 : index
    %c0_28 = arith.constant 0 : index
    %70 = vector.load %arg1[%c2, %c0_27, %c0_28] : memref<3x128x128xbf16, #tpu.memory_space<vmem>>, vector<1x128x128xbf16>
    %71 = vector.shape_cast %70 : vector<1x128x128xbf16> to vector<128x128xbf16>
    %cst_29 = arith.constant dense<0.000000e+00> : vector<16x128xf32>
    %72 = tpu.matmul %69, %71, %cst_29 {dimension_numbers = #tpu.dot_dimension_numbers<[1], [0], [0], [1], [0, 0, 1, 1], [], []>} : vector<16x128xbf16>, vector<128x128xbf16>, vector<16x128xf32> -> vector<16x128xf32>
    %cst_30 = arith.constant dense<0.000000e+00> : vector<128xf32>
    %73 = vector.multi_reduction <add>, %72, %cst_30 [0] : vector<16x128xf32> to vector<128xf32>
    %74 = vector.shape_cast %73 : vector<128xf32> to vector<1x128xf32>
    %75 = arith.mulf %72, %72 : vector<16x128xf32>
    %cst_31 = arith.constant dense<0.000000e+00> : vector<128xf32>
    %76 = vector.multi_reduction <add>, %75, %cst_31 [0] : vector<16x128xf32> to vector<128xf32>
    %77 = vector.shape_cast %76 : vector<128xf32> to vector<1x128xf32>
    %cst_32 = arith.constant 6.250000e-02 : f32
    %78 = vector.broadcast %cst_32 : f32 to vector<1x128xf32>
    %79 = arith.mulf %74, %78 : vector<1x128xf32>
    %cst_33 = arith.constant 6.250000e-02 : f32
    %80 = vector.broadcast %cst_33 : f32 to vector<1x128xf32>
    %81 = arith.mulf %77, %80 : vector<1x128xf32>
    %82 = arith.mulf %79, %79 : vector<1x128xf32>
    %83 = arith.subf %81, %82 : vector<1x128xf32>
    %c2_34 = arith.constant 2 : index
    %c0_35 = arith.constant 0 : index
    %84 = vector.load %arg2[%c2_34, %c0_35] : memref<3x128xf32, #tpu.memory_space<vmem>>, vector<1x128xf32>
    %85 = vector.shape_cast %84 : vector<1x128xf32> to vector<128xf32>
    %86 = vector.shape_cast %85 : vector<128xf32> to vector<1x128xf32>
    %cst_36 = arith.constant 9.99999974E-6 : f32
    %87 = vector.broadcast %cst_36 : f32 to vector<1x128xf32>
    %88 = arith.addf %83, %87 : vector<1x128xf32>
    %89 = math.rsqrt %88 : vector<1x128xf32>
    %90 = arith.mulf %86, %89 : vector<1x128xf32>
    %c2_37 = arith.constant 2 : index
    %c0_38 = arith.constant 0 : index
    %91 = vector.load %arg3[%c2_37, %c0_38] : memref<3x128xf32, #tpu.memory_space<vmem>>, vector<1x128xf32>
    %92 = vector.shape_cast %91 : vector<1x128xf32> to vector<128xf32>
    %93 = vector.shape_cast %92 : vector<128xf32> to vector<1x128xf32>
    %94 = arith.mulf %79, %90 : vector<1x128xf32>
    %95 = arith.subf %93, %94 : vector<1x128xf32>
    %96 = vector.broadcast %90 : vector<1x128xf32> to vector<16x128xf32>
    %97 = arith.mulf %72, %96 : vector<16x128xf32>
    %98 = vector.broadcast %95 : vector<1x128xf32> to vector<16x128xf32>
    %99 = arith.addf %97, %98 : vector<16x128xf32>
    %cst_39 = arith.constant 0.000000e+00 : f32
    %100 = vector.broadcast %cst_39 : f32 to vector<16x128xf32>
    %101 = arith.maximumf %99, %100 : vector<16x128xf32>
    %102 = arith.addf %101, %68 : vector<16x128xf32>
    %c0_40 = arith.constant 0 : index
    %c0_41 = arith.constant 0 : index
    %103 = vector.load %arg4[%c0_40, %c0_41] : memref<16x128xf32, #tpu.memory_space<vmem>>, vector<16x128xf32>
    tpu.vector_store %arg4[%c0_40, %c0_41], %102 {strides = array<i32>} : memref<16x128xf32, #tpu.memory_space<vmem>>, vector<16x128xf32>,
    return
  }
}

</mosaic_0001>

<llo_original>
// kernel: tpu_custom_call.1
$region0: #{tpu_custom_call.1}
  #allocation0 [shape = 'u32[]', space=smem, size = 0x4, offset = 0x4, fixed_abs, tag = 'smem constant byte address 0x4 - core index']
  #allocation1 [shape = 'u32[72,128]{1,0:T(1,128)}', space=vmem, size = 0x9000, scoped, tag = 'internal scratch']
  %s0 = inlined_call_operand.hbm [shape: f32[16,128], index: 0, kind: input, shape index: {}]
  %s1 = inlined_call_operand.hbm [shape: bf16[3,128,128], index: 1, kind: input, shape index: {}]
  %s2 = inlined_call_operand.hbm [shape: f32[3,128], index: 2, kind: input, shape index: {}]
  %s3 = inlined_call_operand.hbm [shape: f32[3,128], index: 3, kind: input, shape index: {}]
  %s4 = inlined_call_operand.hbm [shape: f32[16,128], index: 4, kind: output, shape index: {}]
  %s5 = sld [smem:[#allocation0]]
  $region42: #{tpu_custom_call.1} parent=0
    _
  %s7 = ssub.s32 1, %s5
  %s8 = scalar_select 0, %s7, %s5
  $region1: #{tpu_custom_call.1} parent=0
    #allocation2 [shape = 'u8[8192]{0}', space=vmem, size = 0x2000, scoped, tag = 'input window, operand 0, single buffered']
    #allocation3 [shape = 's32[1]{0}', space=sflag, size = 0x4, scoped, tag = 'scoped memory for tpu_custom_call.1']
    #allocation4 [shape = 's32[1]{0}', space=sflag, size = 0x4, scoped, tag = 'scoped memory for tpu_custom_call.1']
    #allocation5 [shape = 'u8[98304]{0}', space=vmem, size = 0x18000, scoped, tag = 'input window, operand 1, single buffered']
    #allocation6 [shape = 's32[1]{0}', space=sflag, size = 0x4, scoped, tag = 'scoped memory for tpu_custom_call.1']
    #allocation7 [shape = 'u8[2048]{0}', space=vmem, size = 0x800, scoped, tag = 'input window, operand 2, single buffered']
    #allocation8 [shape = 'u8[2048]{0}', space=vmem, size = 0x800, scoped, tag = 'input window, operand 3, single buffered']
    #allocation9 [shape = 's32[1]{0}', space=sflag, size = 0x4, scoped, tag = 'scoped memory for tpu_custom_call.1']
    #allocation10 [shape = 'u8[8192]{0}', space=vmem, size = 0x2000, scoped, tag = 'output window, operand 0, single buffered']
    %9 = vsyncpa [#allocation3], 0
    %10 = vsyncpa [#allocation6], 0
    %11 = vsyncpa [#allocation9], 0
    %12 = vsyncpa [#allocation4], 0
    // Predicated region
    $region2: #{tpu_custom_call.1} parent=1 // pred_check
      _
    $region3: #{tpu_custom_call.1} parent=1 // pred_check_branch
      %14 = sbr.rel (0) target = $region5
    $region4: #{tpu_custom_call.1} parent=1 // pred_region
      %16 = vsyncadd [#allocation3], 0
      %s17 = sshll.u32 %s0, 4
      %s18 = int_to_ptr.hbm [resolvable:$true] %s17
      %s19 = sshll.u32 [#allocation2], 4
      %s20 = int_to_ptr.vmem [resolvable:$true] %s19
      %25 = dma.hbm_to_vmem [thread:$0]  %s18, 256, %s20, [#allocation3], 128, 128, 8
    $region5: #{tpu_custom_call.1} parent=1 // pred_fallthru
      _
    // Predicated region
    $region6: #{tpu_custom_call.1} parent=1 // pred_check
      _
    $region7: #{tpu_custom_call.1} parent=1 // pred_check_branch
      %27 = sbr.rel (0) target = $region9
    $region8: #{tpu_custom_call.1} parent=1 // pred_region
      %29 = vsyncadd [#allocation6], 0
      %s30 = sshll.u32 %s1, 4
      %s31 = int_to_ptr.hbm [resolvable:$true] %s30
      %s32 = sshll.u32 [#allocation5], 4
      %s33 = int_to_ptr.vmem [resolvable:$true] %s32
      %38 = dma.hbm_to_vmem [thread:$0]  %s31, 3072, %s33, [#allocation6], 64, 64, 4
    $region9: #{tpu_custom_call.1} parent=1 // pred_fallthru
      _
    // Predicated region
    $region10: #{tpu_custom_call.1} parent=1 // pred_check
      _
    $region11: #{tpu_custom_call.1} parent=1 // pred_check_branch
      %40 = sbr.rel (0) target = $region13
    $region12: #{tpu_custom_call.1} parent=1 // pred_region
      %42 = vsyncadd [#allocation6], 0
      %s44 = sshll.u32 %s2, 4
      %s45 = int_to_ptr.hbm [resolvable:$true] %s44
      %s46 = sshll.u32 [#allocation7], 4
      %s47 = int_to_ptr.vmem [resolvable:$true] %s46
      %49 = dma.hbm_to_vmem [thread:$0]  %s45, 64, %s47, [#allocation6]
    $region13: #{tpu_custom_call.1} parent=1 // pred_fallthru
      _
    // Predicated region
    $region14: #{tpu_custom_call.1} parent=1 // pred_check
      _
    $region15: #{tpu_custom_call.1} parent=1 // pred_check_branch
      %51 = sbr.rel (0) target = $region17
    $region16: #{tpu_custom_call.1} parent=1 // pred_region
      %53 = vsyncadd [#allocation9], 0
      %s55 = sshll.u32 %s3, 4
      %s56 = int_to_ptr.hbm [resolvable:$true] %s55
      %s57 = sshll.u32 [#allocation8], 4
      %s58 = int_to_ptr.vmem [resolvable:$true] %s57
      %60 = dma.hbm_to_vmem [thread:$0]  %s56, 64, %s58, [#allocation9]
    $region17: #{tpu_custom_call.1} parent=1 // pred_fallthru
      _
    // Predicated region
    $region18: #{tpu_custom_call.1} parent=1 // pred_check
      _
    $region19: #{tpu_custom_call.1} parent=1 // pred_check_branch
      %62 = sbr.rel (0) target = $region21
    $region20: #{tpu_custom_call.1} parent=1 // pred_region
      %64 = dma.done [#allocation3], 256
    $region21: #{tpu_custom_call.1} parent=1 // pred_fallthru
      _
    // Predicated region
    $region22: #{tpu_custom_call.1} parent=1 // pred_check
      _
    $region23: #{tpu_custom_call.1} parent=1 // pred_check_branch
      %66 = sbr.rel (0) target = $region25
    $region24: #{tpu_custom_call.1} parent=1 // pred_region
      %68 = dma.done [#allocation6], 3072
    $region25: #{tpu_custom_call.1} parent=1 // pred_fallthru
      _
    // Predicated region
    $region26: #{tpu_custom_call.1} parent=1 // pred_check
      _
    $region27: #{tpu_custom_call.1} parent=1 // pred_check_branch
      %70 = sbr.rel (0) target = $region29
    $region28: #{tpu_custom_call.1} parent=1 // pred_region
      %72 = dma.done [#allocation6], 64
    $region29: #{tpu_custom_call.1} parent=1 // pred_fallthru
      _
    // Predicated region
    $region30: #{tpu_custom_call.1} parent=1 // pred_check
      _
    $region31: #{tpu_custom_call.1} parent=1 // pred_check_branch
      %74 = sbr.rel (0) target = $region33
    $region32: #{tpu_custom_call.1} parent=1 // pred_region
      %76 = dma.done [#allocation9], 64
    $region33: #{tpu_custom_call.1} parent=1 // pred_fallthru
      _
    %v77 = vld [vmem:[#allocation2] sm:$0xff]
    %v78 = vld [vmem:[#allocation2 + $0x8] sm:$0xff]
    %v79 = vpack.c.bf16 %v78, %v77
    %v80 = vld [vmem:[#allocation5] sm:$0xf]
    %v81 = vld [vmem:[#allocation5 + $0x4] sm:$0xf]
    %v82 = vld [vmem:[#allocation5 + $0x8] sm:$0xf]
    %v83 = vld [vmem:[#allocation5 + $0xc] sm:$0xf]
    %v84 = vld [vmem:[#allocation5 + $0x10] sm:$0xf]
    %v85 = vld [vmem:[#allocation5 + $0x14] sm:$0xf]
    %v86 = vld [vmem:[#allocation5 + $0x18] sm:$0xf]
    %v87 = vld [vmem:[#allocation5 + $0x1c] sm:$0xf]
    %v88 = vld [vmem:[#allocation5 + $0x20] sm:$0xf]
    %v89 = vld [vmem:[#allocation5 + $0x24] sm:$0xf]
    %v90 = vld [vmem:[#allocation5 + $0x28] sm:$0xf]
    %v91 = vld [vmem:[#allocation5 + $0x2c] sm:$0xf]
    %v92 = vld [vmem:[#allocation5 + $0x30] sm:$0xf]
    %v93 = vld [vmem:[#allocation5 + $0x34] sm:$0xf]
    %v94 = vld [vmem:[#allocation5 + $0x38] sm:$0xf]
    %v95 = vld [vmem:[#allocation5 + $0x3c] sm:$0xf]
    %v112 = vunpack.c.l.b16 %v80
    %v113 = vunpack.c.l.b16 %v81
    %v114 = vunpack.c.l.b16 %v82
    %v115 = vunpack.c.l.b16 %v83
    %v116 = vunpack.c.l.b16 %v84
    %v117 = vunpack.c.l.b16 %v85
    %v118 = vunpack.c.l.b16 %v86
    %v119 = vunpack.c.l.b16 %v87
    %v120 = vunpack.c.l.b16 %v88
    %v121 = vunpack.c.l.b16 %v89
    %v122 = vunpack.c.l.b16 %v90
    %v123 = vunpack.c.l.b16 %v91
    %v124 = vunpack.c.l.b16 %v92
    %v125 = vunpack.c.l.b16 %v93
    %v126 = vunpack.c.l.b16 %v94
    %v127 = vunpack.c.l.b16 %v95
    %v128 = vpack.c.b16 %v113, %v112
    %v129 = vpack.c.b16 %v115, %v114
    %v130 = vpack.c.b16 %v117, %v116
    %v131 = vpack.c.b16 %v119, %v118
    %v132 = vpack.c.b16 %v121, %v120
    %v133 = vpack.c.b16 %v123, %v122
    %v134 = vpack.c.b16 %v125, %v124
    %v135 = vpack.c.b16 %v127, %v126
    %144 = vmatpush.bf16.msra.mxu0 %v135
    %145 = vmatpush.bf16.msra.mxu0 %v134
    %146 = vmatpush.bf16.msra.mxu0 %v133
    %147 = vmatpush.bf16.msra.mxu0 %v132
    %148 = vmatpush.bf16.msra.mxu0 %v131
    %149 = vmatpush.bf16.msra.mxu0 %v130
    %150 = vmatpush.bf16.msra.mxu0 %v129
    %151 = vmatpush.bf16.msra.mxu0 %v128
    %152 = vmatmul.bf16.gmra.mxu0 %v79
    %v153 = vpop.f32.mrf.mxu0
    %v154 = vadd.f32 0.0, %v153
    %v155 = vpop.f32.mrf.mxu0
    %v156 = vadd.f32 0.0, %v155
    %157 = vdwg.mxu0
    %v158 = vadd.f32 %v154, %v156
    %v159 = vrot.slane %v158, 4
    %v160 = vadd.f32 %v158, %v159
    %v161 = vrot.slane %v160, 2
    %v162 = vadd.f32 %v160, %v161
    %v163 = vrot.slane %v162, 1
    %v164 = vadd.f32 %v162, %v163
    %v165 = vmul.f32 %v154, %v154
    %v166 = vmul.f32 %v156, %v156
    %v167 = vadd.f32 %v165, %v166
    %v168 = vrot.slane %v167, 4
    %v169 = vadd.f32 %v167, %v168
    %v170 = vrot.slane %v169, 2
    %v171 = vadd.f32 %v169, %v170
    %v172 = vrot.slane %v171, 1
    %v173 = vadd.f32 %v171, %v172
    %v174 = vmul.f32 %v164, 0.0625
    %v175 = vmul.f32 %v173, 0.0625
    %v176 = vmul.f32 %v174, %v174
    %v177 = vsub.f32 %v175, %v176
    %v178 = vld [vmem:[#allocation7] sm:$0x1]
    %v179 = vadd.f32 %v177, 1e-05
    %v180 = vrsqrt.pop %v179
    %v181 = vmul.f32 %v180, %v179
    %v182 = vmul.f32 %v181, %v180
    %v183 = vmul.f32 0.5, %v182
    %v184 = vsub.f32 1.5, %v183
    %v185 = vmul.f32 %v180, %v184
    %vm186 = vweird.f32 %v179
    %vm187 = vweird.f32 %v180
    %vm188 = vmor %vm186, %vm187
    %v189 = vsel %vm188, %v180, %v185
    %v190 = vmul.f32 %v178, %v189
    %v191 = vld [vmem:[#allocation8] sm:$0x1]
    %v192 = vmul.f32 %v174, %v190
    %v193 = vsub.f32 %v191, %v192
    %v194 = vperm.slane %v190, 0
    %v195 = vmul.f32 %v154, %v194
    %v196 = vmul.f32 %v156, %v194
    %v197 = vperm.slane %v193, 0
    %v198 = vadd.f32 %v195, %v197
    %v199 = vadd.f32 %v196, %v197
    %v200 = vmax.f32 %v198, 0.0
    %v201 = vmax.f32 %v199, 0.0
    %v202 = vadd.f32 %v200, %v77
    %v203 = vadd.f32 %v201, %v78
    %v204 = vpack.c.bf16 %v203, %v202
    %s205 = scalar_lea.vmem [#allocation5], 64
    %v206 = vld [vmem:[%s205] sm:$0xf]
    %v207 = vld [vmem:[%s205 + $0x4] sm:$0xf]
    %v208 = vld [vmem:[%s205 + $0x8] sm:$0xf]
    %v209 = vld [vmem:[%s205 + $0xc] sm:$0xf]
    %v210 = vld [vmem:[%s205 + $0x10] sm:$0xf]
    %v211 = vld [vmem:[%s205 + $0x14] sm:$0xf]
    %v212 = vld [vmem:[%s205 + $0x18] sm:$0xf]
    %v213 = vld [vmem:[%s205 + $0x1c] sm:$0xf]
    %v214 = vld [vmem:[%s205 + $0x20] sm:$0xf]
    %v215 = vld [vmem:[%s205 + $0x24] sm:$0xf]
    %v216 = vld [vmem:[%s205 + $0x28] sm:$0xf]
    %v217 = vld [vmem:[%s205 + $0x2c] sm:$0xf]
    %v218 = vld [vmem:[%s205 + $0x30] sm:$0xf]
    %v219 = vld [vmem:[%s205 + $0x34] sm:$0xf]
    %v220 = vld [vmem:[%s205 + $0x38] sm:$0xf]
    %v221 = vld [vmem:[%s205 + $0x3c] sm:$0xf]
    %v238 = vunpack.c.l.b16 %v206
    %v239 = vunpack.c.l.b16 %v207
    %v240 = vunpack.c.l.b16 %v208
    %v241 = vunpack.c.l.b16 %v209
    %v242 = vunpack.c.l.b16 %v210
    %v243 = vunpack.c.l.b16 %v211
    %v244 = vunpack.c.l.b16 %v212
    %v245 = vunpack.c.l.b16 %v213
    %v246 = vunpack.c.l.b16 %v214
    %v247 = vunpack.c.l.b16 %v215
    %v248 = vunpack.c.l.b16 %v216
    %v249 = vunpack.c.l.b16 %v217
    %v250 = vunpack.c.l.b16 %v218
    %v251 = vunpack.c.l.b16 %v219
    %v252 = vunpack.c.l.b16 %v220
    %v253 = vunpack.c.l.b16 %v221
    %v254 = vpack.c.b16 %v239, %v238
    %v255 = vpack.c.b16 %v241, %v240
    %v256 = vpack.c.b16 %v243, %v242
    %v257 = vpack.c.b16 %v245, %v244
    %v258 = vpack.c.b16 %v247, %v246
    %v259 = vpack.c.b16 %v249, %v248
    %v260 = vpack.c.b16 %v251, %v250
    %v261 = vpack.c.b16 %v253, %v252
    %270 = vmatpush.bf16.msra.mxu0 %v261
    %271 = vmatpush.bf16.msra.mxu0 %v260
    %272 = vmatpush.bf16.msra.mxu0 %v259
    %273 = vmatpush.bf16.msra.mxu0 %v258
    %274 = vmatpush.bf16.msra.mxu0 %v257
    %275 = vmatpush.bf16.msra.mxu0 %v256
    %276 = vmatpush.bf16.msra.mxu0 %v255
    %277 = vmatpush.bf16.msra.mxu0 %v254
    %278 = vmatmul.bf16.gmra.mxu0 %v204
    %v279 = vpop.f32.mrf.mxu0
    %v280 = vadd.f32 0.0, %v279
    %v281 = vpop.f32.mrf.mxu0
    %v282 = vadd.f32 0.0, %v281
    %283 = vdwg.mxu0
    %v284 = vadd.f32 %v280, %v282
    %v285 = vrot.slane %v284, 4
    %v286 = vadd.f32 %v284, %v285
    %v287 = vrot.slane %v286, 2
    %v288 = vadd.f32 %v286, %v287
    %v289 = vrot.slane %v288, 1
    %v290 = vadd.f32 %v288, %v289
    %v291 = vmul.f32 %v280, %v280
    %v292 = vmul.f32 %v282, %v282
    %v293 = vadd.f32 %v291, %v292
    %v294 = vrot.slane %v293, 4
    %v295 = vadd.f32 %v293, %v294
    %v296 = vrot.slane %v295, 2
    %v297 = vadd.f32 %v295, %v296
    %v298 = vrot.slane %v297, 1
    %v299 = vadd.f32 %v297, %v298
    %v300 = vmul.f32 %v290, 0.0625
    %v301 = vmul.f32 %v299, 0.0625
    %v302 = vmul.f32 %v300, %v300
    %v303 = vsub.f32 %v301, %v302
    %v304 = vld [vmem:[#allocation7 + $0x1] sm:$0x1]
    %v305 = vadd.f32 %v303, 1e-05
    %v306 = vrsqrt.pop %v305
    %v307 = vmul.f32 %v306, %v305
    %v308 = vmul.f32 %v307, %v306
    %v309 = vmul.f32 0.5, %v308
    %v310 = vsub.f32 1.5, %v309
    %v311 = vmul.f32 %v306, %v310
    %vm312 = vweird.f32 %v305
    %vm313 = vweird.f32 %v306
    %vm314 = vmor %vm312, %vm313
    %v315 = vsel %vm314, %v306, %v311
    %v316 = vmul.f32 %v304, %v315
    %v317 = vld [vmem:[#allocation8 + $0x1] sm:$0x1]
    %v318 = vmul.f32 %v300, %v316
    %v319 = vsub.f32 %v317, %v318
    %v320 = vperm.slane %v316, 0
    %v321 = vmul.f32 %v280, %v320
    %v322 = vmul.f32 %v282, %v320
    %v323 = vperm.slane %v319, 0
    %v324 = vadd.f32 %v321, %v323
    %v325 = vadd.f32 %v322, %v323
    %v326 = vmax.f32 %v324, 0.0
    %v327 = vmax.f32 %v325, 0.0
    %v328 = vadd.f32 %v326, %v202
    %v329 = vadd.f32 %v327, %v203
    %v330 = vpack.c.bf16 %v329, %v328
    %s331 = scalar_lea.vmem [#allocation5], 128
    %v332 = vld [vmem:[%s331] sm:$0xf]
    %v333 = vld [vmem:[%s331 + $0x4] sm:$0xf]
    %v334 = vld [vmem:[%s331 + $0x8] sm:$0xf]
    %v335 = vld [vmem:[%s331 + $0xc] sm:$0xf]
    %v336 = vld [vmem:[%s331 + $0x10] sm:$0xf]
    %v337 = vld [vmem:[%s331 + $0x14] sm:$0xf]
    %v338 = vld [vmem:[%s331 + $0x18] sm:$0xf]
    %v339 = vld [vmem:[%s331 + $0x1c] sm:$0xf]
    %v340 = vld [vmem:[%s331 + $0x20] sm:$0xf]
    %v341 = vld [vmem:[%s331 + $0x24] sm:$0xf]
    %v342 = vld [vmem:[%s331 + $0x28] sm:$0xf]
    %v343 = vld [vmem:[%s331 + $0x2c] sm:$0xf]
    %v344 = vld [vmem:[%s331 + $0x30] sm:$0xf]
    %v345 = vld [vmem:[%s331 + $0x34] sm:$0xf]
    %v346 = vld [vmem:[%s331 + $0x38] sm:$0xf]
    %v347 = vld [vmem:[%s331 + $0x3c] sm:$0xf]
    %v364 = vunpack.c.l.b16 %v332
    %v365 = vunpack.c.l.b16 %v333
    %v366 = vunpack.c.l.b16 %v334
    %v367 = vunpack.c.l.b16 %v335
    %v368 = vunpack.c.l.b16 %v336
    %v369 = vunpack.c.l.b16 %v337
    %v370 = vunpack.c.l.b16 %v338
    %v371 = vunpack.c.l.b16 %v339
    %v372 = vunpack.c.l.b16 %v340
    %v373 = vunpack.c.l.b16 %v341
    %v374 = vunpack.c.l.b16 %v342
    %v375 = vunpack.c.l.b16 %v343
    %v376 = vunpack.c.l.b16 %v344
    %v377 = vunpack.c.l.b16 %v345
    %v378 = vunpack.c.l.b16 %v346
    %v379 = vunpack.c.l.b16 %v347
    %v380 = vpack.c.b16 %v365, %v364
    %v381 = vpack.c.b16 %v367, %v366
    %v382 = vpack.c.b16 %v369, %v368
    %v383 = vpack.c.b16 %v371, %v370
    %v384 = vpack.c.b16 %v373, %v372
    %v385 = vpack.c.b16 %v375, %v374
    %v386 = vpack.c.b16 %v377, %v376
    %v387 = vpack.c.b16 %v379, %v378
    %396 = vmatpush.bf16.msra.mxu0 %v387
    %397 = vmatpush.bf16.msra.mxu0 %v386
    %398 = vmatpush.bf16.msra.mxu0 %v385
    %399 = vmatpush.bf16.msra.mxu0 %v384
    %400 = vmatpush.bf16.msra.mxu0 %v383
    %401 = vmatpush.bf16.msra.mxu0 %v382
    %402 = vmatpush.bf16.msra.mxu0 %v381
    %403 = vmatpush.bf16.msra.mxu0 %v380
    %404 = vmatmul.bf16.gmra.mxu0 %v330
    %v405 = vpop.f32.mrf.mxu0
    %v406 = vadd.f32 0.0, %v405
    %v407 = vpop.f32.mrf.mxu0
    %v408 = vadd.f32 0.0, %v407
    %409 = vdwg.mxu0
    %v410 = vadd.f32 %v406, %v408
    %v411 = vrot.slane %v410, 4
    %v412 = vadd.f32 %v410, %v411
    %v413 = vrot.slane %v412, 2
    %v414 = vadd.f32 %v412, %v413
    %v415 = vrot.slane %v414, 1
    %v416 = vadd.f32 %v414, %v415
    %v417 = vmul.f32 %v406, %v406
    %v418 = vmul.f32 %v408, %v408
    %v419 = vadd.f32 %v417, %v418
    %v420 = vrot.slane %v419, 4
    %v421 = vadd.f32 %v419, %v420
    %v422 = vrot.slane %v421, 2
    %v423 = vadd.f32 %v421, %v422
    %v424 = vrot.slane %v423, 1
    %v425 = vadd.f32 %v423, %v424
    %v426 = vmul.f32 %v416, 0.0625
    %v427 = vmul.f32 %v425, 0.0625
    %v428 = vmul.f32 %v426, %v426
    %v429 = vsub.f32 %v427, %v428
    %v430 = vld [vmem:[#allocation7 + $0x2] sm:$0x1]
    %v431 = vadd.f32 %v429, 1e-05
    %v432 = vrsqrt.pop %v431
    %v433 = vmul.f32 %v432, %v431
    %v434 = vmul.f32 %v433, %v432
    %v435 = vmul.f32 0.5, %v434
    %v436 = vsub.f32 1.5, %v435
    %v437 = vmul.f32 %v432, %v436
    %vm438 = vweird.f32 %v431
    %vm439 = vweird.f32 %v432
    %vm440 = vmor %vm438, %vm439
    %v441 = vsel %vm440, %v432, %v437
    %v442 = vmul.f32 %v430, %v441
    %v443 = vld [vmem:[#allocation8 + $0x2] sm:$0x1]
    %v444 = vmul.f32 %v426, %v442
    %v445 = vsub.f32 %v443, %v444
    %v446 = vperm.slane %v442, 0
    %v447 = vmul.f32 %v406, %v446
    %v448 = vmul.f32 %v408, %v446
    %v449 = vperm.slane %v445, 0
    %v450 = vadd.f32 %v447, %v449
    %v451 = vadd.f32 %v448, %v449
    %v452 = vmax.f32 %v450, 0.0
    %v453 = vmax.f32 %v451, 0.0
    %v454 = vadd.f32 %v452, %v328
    %v455 = vadd.f32 %v453, %v329
    %456 = vst [vmem:[#allocation10] sm:$0xff] %v454
    %457 = vst [vmem:[#allocation10 + $0x8] sm:$0xff] %v455
    // Predicated region
    $region34: #{tpu_custom_call.1} parent=1 // pred_check
      _
    $region35: #{tpu_custom_call.1} parent=1 // pred_check_branch
      %459 = sbr.rel (0) target = $region37
    $region36: #{tpu_custom_call.1} parent=1 // pred_region
      %461 = vsyncadd [#allocation4], 0
      %s462 = sshll.u32 [#allocation10], 4
      %s463 = int_to_ptr.vmem [resolvable:$true] %s462
      %s464 = sshll.u32 %s4, 4
      %s465 = int_to_ptr.hbm [resolvable:$true] %s464
      %470 = dma.vmem_to_hbm [thread:$0]  %s463, 256, %s465, [#allocation4], 128, 128, 8
    $region37: #{tpu_custom_call.1} parent=1 // pred_fallthru
      _
    // Predicated region
    $region38: #{tpu_custom_call.1} parent=1 // pred_check
      _
    $region39: #{tpu_custom_call.1} parent=1 // pred_check_branch
      %472 = sbr.rel (0) target = $region41
    $region40: #{tpu_custom_call.1} parent=1 // pred_region
      %474 = dma.done [#allocation4], 256
    $region41: #{tpu_custom_call.1} parent=1 // pred_fallthru
      _
    %475 = vsyncpa [#allocation3], 1
    %476 = vsyncpa [#allocation6], 1
    %477 = vsyncpa [#allocation9], 1
    %478 = vsyncpa [#allocation4], 1

</llo_original>
